<compile_context>
chip_gen: v5e
topology: v5e:2x2
jax: 0.10.0
libtpu: 0.0.40
codegen_flags: <defaults>
</compile_context>

<pallas_src>
import functools

import jax
import jax.numpy as jnp
from jax.experimental import pallas as pl
from jax.experimental.pallas import tpu as pltpu

_EPS = 1e-5          # PyTorch InstanceNorm2d defaults: affine=False, eps=1e-5
_SUB = 8             # sublane alignment
_OFFS = tuple((dy, dx) for dy in (-1, 0, 1) for dx in (-1, 0, 1))


def _round_up(x, m):
    return (x + m - 1) // m * m


# ---------------------------------------------------------------------------
# One-time probe of pltpu.roll's rotation convention (it matches jnp.roll on
# current releases; probing keeps the kernel correct if that ever changes).
# ---------------------------------------------------------------------------
def _probe_roll_kernel(x_ref, o_ref):
    o_ref[...] = pltpu.roll(x_ref[...], shift=1, axis=1)


@functools.lru_cache(maxsize=None)
def _roll_matches_jnp_roll():
    x = jnp.arange(8 * 128, dtype=jnp.float32).reshape(8, 128)
    y = pl.pallas_call(
        _probe_roll_kernel,
        out_shape=jax.ShapeDtypeStruct((8, 128), jnp.float32),
    )(x)
    return bool(jnp.array_equal(y, jnp.roll(x, 1, axis=1)))


# ---------------------------------------------------------------------------
# Kernel
# ---------------------------------------------------------------------------
def _instance_norm_relu(t):
    """Per-row (= per sample,channel) normalization over the lane (spatial) axis,
    then ReLU.  Single pass: var = E[x^2] - mean^2 (biased, like InstanceNorm2d)."""
    inv_n = 1.0 / t.shape[-1]
    s = jnp.sum(t, axis=-1, keepdims=True)
    ss = jnp.sum(t * t, axis=-1, keepdims=True)
    m = s * inv_n
    v = jnp.maximum(ss * inv_n - m * m, 0.0)
    return jnp.maximum((t - m) * jax.lax.rsqrt(v + _EPS), 0.0)


def _voxres_kernel(x_ref, w1_ref, w2_ref, m_ref, o_ref, x9_ref,
                   *, Cp, HW, B_blk, shifts):
    """One grid step = B_blk samples.

    x_ref : (B_blk, Cp, HW) f32                 activations, lane-dense spatial axis
    w*_ref: (Cp, 9*Cp + 8)  matmul dtype        packed conv weights (+ bias column)
    m_ref : (9, HW) f32                         per-tap boundary masks
    o_ref : (B_blk, Cp, HW) f32                 residual output
    x9_ref: (9*Cp + 8, B_blk*HW) matmul dtype   packed taps (im2col) + ones rows
    """
    KC = 9 * Cp
    mm_dtype = x9_ref.dtype
    masks = m_ref[...]                                        # (9, HW) f32

    # Constant ones rows feeding the folded-bias column of the weights.  Written
    # every step on purpose: scratch is per-core, so a program_id()==0 guard would
    # miss the second TensorCore under megacore ("parallel") grid partitioning.
    x9_ref[KC:, :] = jnp.ones((x9_ref.shape[0] - KC, x9_ref.shape[1]), mm_dtype)

    def pack_taps(y, b):
        # y: (Cp, HW) f32, already normalized + ReLU'd.  Write the 9 shifted and
        # boundary-masked copies into this sample's column block of x9.
        col = b * HW
        for k in range(9):
            if shifts[k] == 0:
                tap = y                                       # center tap: mask is all ones
            else:
                # XLU lane rotate; the mask zeroes every wrapped / out-of-bounds tap.
                tap = pltpu.roll(y, shift=shifts[k], axis=1) * masks[k:k + 1, :]
            x9_ref[k * Cp:(k + 1) * Cp, col:col + HW] = tap.astype(mm_dtype)

    # ---- InstanceNorm -> ReLU -> Conv1 (one fused MXU matmul over all samples) ----
    for b in range(B_blk):
        pack_taps(_instance_norm_relu(x_ref[b]), b)
    h = jnp.dot(w1_ref[...], x9_ref[...], preferred_element_type=jnp.float32)

    # ---- InstanceNorm -> ReLU -> Conv2 ----
    for b in range(B_blk):
        pack_taps(_instance_norm_relu(h[:, b * HW:(b + 1) * HW]), b)
    g = jnp.dot(w2_ref[...], x9_ref[...], preferred_element_type=jnp.float32)

    # ---- residual add (no final ReLU) ----
    for b in range(B_blk):
        o_ref[b] = (x_ref[b] + g[:, b * HW:(b + 1) * HW]).astype(o_ref.dtype)


# ---------------------------------------------------------------------------
# Host-side packing helpers
# ---------------------------------------------------------------------------
def _make_tap_masks(H, W):
    """masks[k, h*W + w] = 1 iff (h+dy, w+dx) lies inside the image, k=(dy+1)*3+(dx+1)."""
    h = jnp.arange(H).reshape(H, 1)
    w = jnp.arange(W).reshape(1, W)
    rows = []
    for dy, dx in _OFFS:
        valid = (h + dy >= 0) & (h + dy < H) & (w + dx >= 0) & (w + dx < W)
        rows.append(valid.astype(jnp.float32).reshape(H * W))
    return jnp.stack(rows)                                    # (9, H*W)


def _pack_weight(w_oihw, bias, Cp):
    """(C, C, 3, 3) OIHW + (C,) bias  ->  (Cp, 9*Cp + 8) with
    out[co, k*Cp + ci] = w[co, ci, ky, kx]  (k = ky*3 + kx), and
    out[co, 9*Cp]      = bias[co]  (contracted against the ones rows of x9)."""
    C = w_oihw.shape[0]
    K = 9 * Cp + _SUB
    wt = jnp.transpose(w_oihw, (0, 2, 3, 1))                  # (C, 3, 3, C_in)
    wp = jnp.zeros((Cp, 3, 3, Cp), w_oihw.dtype).at[:C, :, :, :C].set(wt)
    out = jnp.zeros((Cp, K), w_oihw.dtype)
    out = out.at[:, :9 * Cp].set(wp.reshape(Cp, 9 * Cp))
    out = out.at[:C, 9 * Cp].set(bias)
    return out


def _choose_batch_block(N, Cp, HW, mm_itemsize):
    """Largest divisor of N (<= 8) that keeps the 9x tap buffer well under VMEM
    (v7x: 64 MiB) and, when N >= 2, leaves >= 2 grid steps for the two v7x cores."""
    x9_cap = 16 * 1024 * 1024
    best = 1
    for b in range(1, min(N, 8) + 1):
        if N % b:
            continue
        if N >= 2 and N // b < 2:
            continue
        if (9 * Cp + _SUB) * b * HW * mm_itemsize > x9_cap:
            continue
        best = b
    return best


# ---------------------------------------------------------------------------
# Public wrapper
# ---------------------------------------------------------------------------
def voxres(x_nchw, w1, b1, w2, b2, *, matmul_dtype=jnp.bfloat16, batch_block=None):
    """VoxResModule forward.  x_nchw: (N, C, H, W) f32, conv weights in OIHW.

    matmul_dtype is the dtype of the packed taps / weights fed to the MXU
    (bf16 recommended on v5e/v6e/v7x; accumulation is always f32).
    NOTE: call outside jit (a tiny one-time probe kernel runs eagerly).
    """
    N, C, H, W = x_nchw.shape
    HW = H * W
    Cp = _round_up(C, _SUB)                # sublane-aligned channel count
    K = 9 * Cp + _SUB                      # 9 taps x Cp channels + ones/bias rows
    mm_itemsize = jnp.dtype(matmul_dtype).itemsize

    x_flat = x_nchw.astype(jnp.float32).reshape(N, C, HW)     # pure reshape, lane-dense
    if Cp != C:                                               # zero channel padding
        x_flat = jnp.pad(x_flat, ((0, 0), (0, Cp - C), (0, 0)))

    w1p = _pack_weight(w1, b1, Cp).astype(matmul_dtype)
    w2p = _pack_weight(w2, b2, Cp).astype(matmul_dtype)
    masks = _make_tap_masks(H, W)

    B_blk = batch_block if batch_block is not None else _choose_batch_block(
        N, Cp, HW, mm_itemsize)
    assert N % B_blk == 0, "batch_block must divide the batch size"

    # tap_k[p] must equal y[p + d]; translate to the probed roll convention.
    sgn = -1 if _roll_matches_jnp_roll() else 1
    shifts = tuple((sgn * (dy * W + dx)) % HW for dy, dx in _OFFS)

    kernel = functools.partial(_voxres_kernel, Cp=Cp, HW=HW, B_blk=B_blk,
                               shifts=shifts)

    # VMEM budget: double-buffered activation blocks + the 9x packed-tap buffer.
    vmem_est = (2 * 2 * B_blk * Cp * HW * 4        # in + out blocks, double-buffered
                + K * B_blk * HW * mm_itemsize     # packed taps (im2col)
                + 2 * Cp * K * mm_itemsize         # packed weights
                + 9 * HW * 4)                      # masks
    vmem_limit = int(min(max(2 * vmem_est, 8 * 2**20), 48 * 2**20))  # v7x-safe cap

    out_flat = pl.pallas_call(
        kernel,
        out_shape=jax.ShapeDtypeStruct((N, Cp, HW), jnp.float32),
        grid_spec=pltpu.PrefetchScalarGridSpec(
            num_scalar_prefetch=0,
            grid=(N // B_blk,),                    # one step per batch block
            in_specs=[
                pl.BlockSpec((B_blk, Cp, HW), lambda b: (b, 0, 0)),
                pl.BlockSpec((Cp, K), lambda b: (0, 0)),
                pl.BlockSpec((Cp, K), lambda b: (0, 0)),
                pl.BlockSpec((9, HW), lambda b: (0, 0)),
            ],
            out_specs=pl.BlockSpec((B_blk, Cp, HW), lambda b: (b, 0, 0)),
            scratch_shapes=[
                pltpu.VMEM((K, B_blk * HW), matmul_dtype),   # packed taps + ones rows
            ],
        ),
        compiler_params=pltpu.CompilerParams(
            dimension_semantics=("parallel",),     # batch blocks -> megacore on v7x
            vmem_limit_bytes=vmem_limit,
        ),
    )(x_flat, w1p, w2p, masks)

    return out_flat[:, :C, :].reshape(N, C, H, W)


# ---------------------------------------------------------------------------
# Pure-JAX reference (matches the PyTorch VoxResModule)
# ---------------------------------------------------------------------------
def voxres_ref(x, w1, b1, w2, b2):
    def inorm(t):
        m = t.mean(axis=(2, 3), keepdims=True)
        v = ((t - m) ** 2).mean(axis=(2, 3), keepdims=True)
        return (t - m) / jnp.sqrt(v + _EPS)

    def conv(t, w, b):
        y = jax.lax.conv_general_dilated(
            t, w, (1, 1), [(1, 1), (1, 1)],
            dimension_numbers=("NCHW", "OIHW", "NCHW"),
            precision=jax.lax.Precision.HIGHEST)
        return y + b[None, :, None, None]

    y = conv(jax.nn.relu(inorm(x)), w1, b1)
    y = conv(jax.nn.relu(inorm(y)), w2, b2)
    return x + y


if __name__ == "__main__":
    N, C, H, W = 2, 4, 16, 16   # batch=2, num_channels=4, spatial 16x16

    key = jax.random.PRNGKey(0)
    k1, k2, k3, k4, k5 = jax.random.split(key, 5)
    x = jax.random.normal(k1, (N, C, H, W), jnp.float32)
    w1 = jax.random.normal(k2, (C, C, 3, 3), jnp.float32) * 0.1
    b1 = jax.random.normal(k3, (C,), jnp.float32) * 0.1
    w2 = jax.random.normal(k4, (C, C, 3, 3), jnp.float32) * 0.1
    b2 = jax.random.normal(k5, (C,), jnp.float32) * 0.1

    y_ref = voxres_ref(x, w1, b1, w2, b2)

    # Recommended production config: bf16 taps/weights (f32 accumulation),
    # heuristic batch blocking (2 grid steps here -> both v7x TensorCores busy).
    y_bf16 = jax.block_until_ready(
        voxres(x, w1, b1, w2, b2, matmul_dtype=jnp.bfloat16))
    err_bf16 = float(jnp.max(jnp.abs(y_bf16 - y_ref)))
    assert err_bf16 < 6e-2, f"bf16 path mismatch vs reference: max abs diff {err_bf16}"

    # f32 taps/weights with the whole batch fused into one grid step: exercises the
    # multi-sample wide-lane matmul path.  Tolerance covers possible reduced-precision
    # f32 MXU passes.
    y_f32 = jax.block_until_ready(
        voxres(x, w1, b1, w2, b2, matmul_dtype=jnp.float32, batch_block=2))
    err_f32 = float(jnp.max(jnp.abs(y_f32 - y_ref)))
    assert err_f32 < 3e-2, f"f32 path mismatch vs reference: max abs diff {err_f32}"

    print("KERNEL_OK")
</pallas_src>

<mosaic_0001>
module attributes {stable_mosaic.version = 11 : i64} {
  func.func @_probe_roll_kernel(%arg0: memref<8x128xf32, #tpu.memory_space<vmem>>, %arg1: memref<8x128xf32, #tpu.memory_space<vmem>>) attributes {dimension_semantics = [], scalar_prefetch = 0 : i64, scratch_operands = 0 : i64, tpu.core_type = #tpu.core_type<tc>} {
    %c0 = arith.constant 0 : index
    %c0_0 = arith.constant 0 : index
    %0 = vector.load %arg0[%c0, %c0_0] : memref<8x128xf32, #tpu.memory_space<vmem>>, vector<8x128xf32>
    %c1_i32 = arith.constant 1 : i32
    %1 = tpu.dynamic_rotate %0 by %c1_i32 dim 1 : vector<8x128xf32>, i32 -> vector<8x128xf32>
    %c0_1 = arith.constant 0 : index
    %c0_2 = arith.constant 0 : index
    %2 = vector.load %arg1[%c0_1, %c0_2] : memref<8x128xf32, #tpu.memory_space<vmem>>, vector<8x128xf32>
    tpu.vector_store %arg1[%c0_1, %c0_2], %1 {strides = array<i32>} : memref<8x128xf32, #tpu.memory_space<vmem>>, vector<8x128xf32>,
    return
  }
}

</mosaic_0001>

<llo_original>
// kernel: tpu_custom_call.1
$region0: #{tpu_custom_call.1}
  #allocation0 [shape = 'u32[]', space=smem, size = 0x4, offset = 0x4, fixed_abs, tag = 'smem constant byte address 0x4 - core index']
  #allocation1 [shape = 'u32[72,128]{1,0:T(1,128)}', space=vmem, size = 0x9000, scoped, tag = 'internal scratch']
  %s0 = inlined_call_operand.hbm [shape: f32[8,128], index: 0, kind: input, shape index: {}]
  %s1 = inlined_call_operand.hbm [shape: f32[8,128], index: 1, kind: output, shape index: {}]
  %s2 = sld [smem:[#allocation0]]
  $region18: #{tpu_custom_call.1} parent=0
    _
  %s4 = ssub.s32 1, %s2
  %s5 = scalar_select 0, %s4, %s2
  $region1: #{tpu_custom_call.1} parent=0
    #allocation2 [shape = 'u8[4096]{0}', space=vmem, size = 0x1000, scoped, tag = 'input window, operand 0, single buffered']
    #allocation3 [shape = 's32[1]{0}', space=sflag, size = 0x4, scoped, tag = 'scoped memory for tpu_custom_call.1']
    #allocation4 [shape = 's32[1]{0}', space=sflag, size = 0x4, scoped, tag = 'scoped memory for tpu_custom_call.1']
    #allocation5 [shape = 'u8[4096]{0}', space=vmem, size = 0x1000, scoped, tag = 'output window, operand 0, single buffered']
    %6 = vsyncpa [#allocation3], 0
    %7 = vsyncpa [#allocation4], 0
    // Predicated region
    $region2: #{tpu_custom_call.1} parent=1 // pred_check
      _
    $region3: #{tpu_custom_call.1} parent=1 // pred_check_branch
      %9 = sbr.rel (0) target = $region5
    $region4: #{tpu_custom_call.1} parent=1 // pred_region
      %11 = vsyncadd [#allocation3], 0
      %s13 = sshll.u32 %s0, 4
      %s14 = int_to_ptr.hbm [resolvable:$true] %s13
      %s15 = sshll.u32 [#allocation2], 4
      %s16 = int_to_ptr.vmem [resolvable:$true] %s15
      %18 = dma.hbm_to_vmem [thread:$0]  %s14, 128, %s16, [#allocation3]
    $region5: #{tpu_custom_call.1} parent=1 // pred_fallthru
      _
    // Predicated region
    $region6: #{tpu_custom_call.1} parent=1 // pred_check
      _
    $region7: #{tpu_custom_call.1} parent=1 // pred_check_branch
      %20 = sbr.rel (0) target = $region9
    $region8: #{tpu_custom_call.1} parent=1 // pred_region
      %22 = dma.done [#allocation3], 128
    $region9: #{tpu_custom_call.1} parent=1 // pred_fallthru
      _
    %v23 = vld [vmem:[#allocation2] sm:$0xff]
    %24 = vrot.lane.b32.xlu0 %v23, 1
    %v25 = vpop.permute.xlu0 %24
    %26 = vst [vmem:[#allocation5] sm:$0xff] %v25
    // Predicated region
    $region10: #{tpu_custom_call.1} parent=1 // pred_check
      _
    $region11: #{tpu_custom_call.1} parent=1 // pred_check_branch
      %28 = sbr.rel (0) target = $region13
    $region12: #{tpu_custom_call.1} parent=1 // pred_region
      %30 = vsyncadd [#allocation4], 0
      %s32 = sshll.u32 [#allocation5], 4
      %s33 = int_to_ptr.vmem [resolvable:$true] %s32
      %s34 = sshll.u32 %s1, 4
      %s35 = int_to_ptr.hbm [resolvable:$true] %s34
      %37 = dma.vmem_to_hbm [thread:$0]  %s33, 128, %s35, [#allocation4]
    $region13: #{tpu_custom_call.1} parent=1 // pred_fallthru
      _
    // Predicated region
    $region14: #{tpu_custom_call.1} parent=1 // pred_check
      _
    $region15: #{tpu_custom_call.1} parent=1 // pred_check_branch
      %39 = sbr.rel (0) target = $region17
    $region16: #{tpu_custom_call.1} parent=1 // pred_region
      %41 = dma.done [#allocation4], 128
    $region17: #{tpu_custom_call.1} parent=1 // pred_fallthru
      _
    %42 = vsyncpa [#allocation3], 1
    %43 = vsyncpa [#allocation4], 1

</llo_original>
